<compile_context>
chip_gen: v5e
topology: v5e:2x2
jax: 0.10.0
libtpu: 0.0.40
codegen_flags: <defaults>
</compile_context>

<pallas_src>
import math

import jax
import jax.numpy as jnp
from jax.experimental import pallas as pl
from jax.experimental.pallas import tpu as pltpu

LANES = 128  # TPU vreg lane width


# ----------------------------------------------------------------------------
# Pallas kernel: fused (STGP projection ∘ FC1) + FC2 + FC3, batch-tiled.
#   x_ref   : [TB, V]        f32   (cast to bf16 in-kernel)
#   w1_ref  : [V, 128]       bf16  (W_stgp @ W1, zero-padded on the out dim)
#   w23_ref : [2, 128, 128]  bf16  (W2, W3 zero-padded + stacked)
#   b_ref   : [8, 128]       f32   (rows 0..2 = b1_eff, b2, b3 zero-padded)
#   out_ref : [TB, n_out]    f32   (narrow, contiguous writeback)
# ----------------------------------------------------------------------------
def stgp_mlp_kernel(x_ref, w1_ref, w23_ref, b_ref, out_ref):
    bf16 = jnp.bfloat16
    x = x_ref[...].astype(bf16)          # in-kernel cast, no extra HBM pass
    biases = b_ref[...]                  # [8, 128] f32

    # Fused layer: relu(X @ (W_stgp @ W1) + b1_eff)   (f32 accumulate on MXU)
    h1 = jnp.dot(x, w1_ref[...], preferred_element_type=jnp.float32)
    h1 = jnp.maximum(h1 + biases[0:1, :], 0.0)

    # FC layer 2 + ReLU.
    h2 = jnp.dot(h1.astype(bf16), w23_ref[0],
                 preferred_element_type=jnp.float32)
    h2 = jnp.maximum(h2 + biases[1:2, :], 0.0)

    # FC output layer (no activation). Only the live output lane(s) are stored.
    out = jnp.dot(h2.astype(bf16), w23_ref[1],
                  preferred_element_type=jnp.float32) + biases[2:3, :]
    out_ref[...] = out[:, :out_ref.shape[1]].astype(out_ref.dtype)


def stgp_forward(x, packed, tb=2048):
    """Fused forward pass. x: [B, V] float32. Returns [B, n_out] float32."""
    w1c, w23, b_slab, n_out = packed
    B, V = x.shape

    # Batch tiling: sublane-align, then either a single tile (small B) or a
    # grid of TB-row tiles (large B). Padded rows are zeros and sliced off.
    B_pad = ((B + 7) // 8) * 8
    if B_pad <= tb:
        TB = B_pad
    else:
        TB = tb
        B_pad = ((B_pad + TB - 1) // TB) * TB
    if B_pad != B:
        x = jnp.pad(x, ((0, B_pad - B), (0, 0)))
    grid = (B_pad // TB,)

    flops = 2 * B_pad * (V * LANES + 2 * LANES * LANES)
    bytes_accessed = (B_pad * V * 4 + B_pad * n_out * 4
                      + w1c.size * 2 + w23.size * 2 + b_slab.size * 4)

    out = pl.pallas_call(
        stgp_mlp_kernel,
        out_shape=jax.ShapeDtypeStruct((B_pad, n_out), jnp.float32),
        grid_spec=pltpu.PrefetchScalarGridSpec(
            num_scalar_prefetch=0,
            grid=grid,
            in_specs=[
                # Batch-tiled input, streamed per grid step.
                pl.BlockSpec((TB, V), lambda i: (i, 0)),
                # Weights / biases: constant block index -> VMEM-resident.
                pl.BlockSpec(w1c.shape, lambda i: (0, 0)),
                pl.BlockSpec(w23.shape, lambda i: (0, 0, 0)),
                pl.BlockSpec(b_slab.shape, lambda i: (0, 0)),
            ],
            out_specs=pl.BlockSpec((TB, n_out), lambda i: (i, 0)),
        ),
        compiler_params=pltpu.CompilerParams(
            dimension_semantics=("parallel",)),
        cost_estimate=pl.CostEstimate(flops=flops, transcendentals=0,
                                      bytes_accessed=bytes_accessed),
    )(x, w1c, w23, b_slab)

    return out[:B]


# ----------------------------------------------------------------------------
# Parameter construction + packing (plain-JAX glue, done once at init time).
# ----------------------------------------------------------------------------
def sample_inverse_gamma(key, a, b):
    # InvGamma(a, b) = b / Gamma(a, 1)
    g = jax.random.gamma(key, a)
    return b / g


def make_grids(side, dimensions=2):
    """Regular grid on [0, 1]^dimensions with side^dimensions points."""
    coords = jnp.linspace(0.0, 1.0, side)
    mesh = jnp.meshgrid(*([coords] * dimensions), indexing="ij")
    return jnp.stack([m.reshape(-1) for m in mesh], axis=-1)  # [V, dims]


def stgp_basis(grids, poly_degree, a, b):
    """2-D polynomial basis with exponentially decaying eigenvalue scaling."""
    s1 = grids[:, 0]
    s2 = grids[:, 1]
    cols = []
    k = 0
    for total in range(poly_degree + 1):
        for p in range(total + 1):
            q = total - p
            lam = b * math.exp(-a * k)          # eigenvalue decay
            cols.append(math.sqrt(lam) * (s1 ** p) * (s2 ** q))
            k += 1
    return jnp.stack(cols, axis=-1).astype(jnp.float32)  # [V, K]


def init_params(key, in_feature, grids, fully_connected_layers,
                poly_degree=10, a=0.01, b=1.0, a_theta=2.0, b_theta=1.0):
    H0 = fully_connected_layers[0]
    hidden = tuple(fully_connected_layers[1:])  # e.g. (20, 30, 1)

    k_ig0, k_theta, k_ig1, *k_fc = jax.random.split(key, 3 + 2 * len(hidden))

    # --- STGP input layer: fixed effective linear map W_stgp = Psi @ Theta ---
    psi = stgp_basis(grids, poly_degree, a, b)              # [V, K]
    K = psi.shape[1]
    sigma2_in = sample_inverse_gamma(k_ig0, a_theta, b_theta)
    theta = jnp.sqrt(sigma2_in) * jax.random.normal(k_theta, (K, H0),
                                                    dtype=jnp.float32)
    w_stgp = psi @ theta                                     # [V, H0]
    b_stgp = jnp.zeros((1, H0), dtype=jnp.float32)           # identically zero

    # --- FC network: weights/biases ~ N(0, sigma_theta^2), sigma^2 ~ InvGamma -
    sigma2_fc = sample_inverse_gamma(k_ig1, a_theta, b_theta)
    sigma_fc = jnp.sqrt(sigma2_fc)
    fc_params = []
    cur = H0
    for i, units in enumerate(hidden):
        kw, kb = k_fc[2 * i], k_fc[2 * i + 1]
        # stored as [in, out] (== PyTorch Linear weight transposed)
        w = sigma_fc * jax.random.normal(kw, (cur, units), dtype=jnp.float32)
        bb = sigma_fc * jax.random.normal(kb, (1, units), dtype=jnp.float32)
        fc_params.append((w, bb))
        cur = units

    return [(w_stgp, b_stgp)] + fc_params


def pack_params(params, lanes=LANES):
    """Fuse STGP projection into FC1 and pack lane-dense VMEM slabs (once)."""
    (w_stgp, b_stgp), (w1, b1), (w2, b2), (w3, b3) = params
    V = w_stgp.shape[0]
    assert max(w1.shape[1], w2.shape[0], w2.shape[1],
               w3.shape[0], w3.shape[1]) <= lanes

    # f32 pre-multiply (exact fusion: no bias/activation between the layers).
    w1c_full = w_stgp @ w1                                   # [V, h1]
    b1_eff = (b1 + b_stgp @ w1).reshape(-1)                  # b_stgp == 0 here

    def pad_w(w):
        return (jnp.zeros((lanes, lanes), jnp.float32)
                .at[:w.shape[0], :w.shape[1]].set(w))

    def pad_b(bv):
        bv = bv.reshape(-1)
        return jnp.zeros((lanes,), jnp.float32).at[:bv.shape[0]].set(bv)

    # Fused first weight: [V, 128] bf16 (out dim zero-padded, lane-dense).
    w1c = (jnp.zeros((V, lanes), jnp.float32)
           .at[:, :w1c_full.shape[1]].set(w1c_full)
           .astype(jnp.bfloat16))
    # Remaining weights: [2, 128, 128] bf16.
    w23 = jnp.stack([pad_w(w2), pad_w(w3)]).astype(jnp.bfloat16)
    # Bias slab: [8, 128] f32 — rows 0..2 = b1_eff, b2, b3.
    b_slab = (jnp.zeros((8, lanes), jnp.float32)
              .at[0].set(pad_b(b1_eff))
              .at[1].set(pad_b(b2))
              .at[2].set(pad_b(b3)))
    n_out = w3.shape[1]
    return w1c, w23, b_slab, n_out


# ----------------------------------------------------------------------------
# Pure-f32 reference (true module semantics; kernel uses bf16 MXU operands,
# so the comparison uses a bf16-appropriate relative tolerance).
# ----------------------------------------------------------------------------
def reference_forward(x, params):
    (w0, b0), (w1, b1), (w2, b2), (w3, b3) = params
    z = x @ w0 + b0
    h1 = jnp.maximum(z @ w1 + b1, 0.0)
    h2 = jnp.maximum(h1 @ w2 + b2, 0.0)
    return h2 @ w3 + b3


if __name__ == "__main__":
    key = jax.random.PRNGKey(0)
    k_param, k_x = jax.random.split(key)

    # Small shapes consistent with the module:
    #   grids: 8x8 regular 2-D grid -> in_feature (V) = 64
    #   fully_connected_layers = (32, 20, 30, 1)
    batch = 8
    side = 8
    dimensions = 2
    grids = make_grids(side, dimensions)          # [64, 2]
    in_feature = grids.shape[0]                   # 64
    fully_connected_layers = (32, 20, 30, 1)

    params = init_params(
        k_param, in_feature, grids, fully_connected_layers,
        poly_degree=10, a=0.01, b=1.0, a_theta=2.0, b_theta=1.0,
    )
    packed = pack_params(params)                  # built once at init

    x = jax.random.normal(k_x, (batch, in_feature), dtype=jnp.float32)

    out = stgp_forward(x, packed)
    out = jax.block_until_ready(out)

    ref = reference_forward(x, params)
    assert out.shape == (batch, 1), out.shape
    rel_err = float(jnp.max(jnp.abs(out - ref)) /
                    jnp.maximum(jnp.max(jnp.abs(ref)), 1e-6))
    assert rel_err < 5e-2, f"kernel/reference mismatch, rel_err={rel_err}"

    print("KERNEL_OK")
</pallas_src>

<mosaic_0001>
module attributes {stable_mosaic.version = 11 : i64} {
  func.func @stgp_mlp_kernel(%arg0: i32, %arg1: memref<8x64xf32, #tpu.memory_space<vmem>>, %arg2: memref<64x128xbf16, #tpu.memory_space<vmem>>, %arg3: memref<2x128x128xbf16, #tpu.memory_space<vmem>>, %arg4: memref<8x128xf32, #tpu.memory_space<vmem>>, %arg5: memref<8x1xf32, #tpu.memory_space<vmem>>) attributes {dimension_semantics = [#tpu.dimension_semantics<parallel>], iteration_bounds = array<i64: 1>, scalar_prefetch = 0 : i64, scratch_operands = 0 : i64, tpu.core_type = #tpu.core_type<tc>, window_params = [{transform_indices = @transform_0, window_bounds = array<i64: 8, 64>}, {pipeline_mode = #tpu.pipeline_mode<synchronous>, transform_indices = @transform_1, window_bounds = array<i64: 64, 128>}, {pipeline_mode = #tpu.pipeline_mode<synchronous>, transform_indices = @transform_2, window_bounds = array<i64: 2, 128, 128>}, {pipeline_mode = #tpu.pipeline_mode<synchronous>, transform_indices = @transform_3, window_bounds = array<i64: 8, 128>}, {transform_indices = @transform_4, window_bounds = array<i64: 8, 1>}]} {
    %c0 = arith.constant 0 : index
    %c0_0 = arith.constant 0 : index
    %0 = vector.load %arg1[%c0, %c0_0] : memref<8x64xf32, #tpu.memory_space<vmem>>, vector<8x64xf32>
    %1 = arith.truncf %0 : vector<8x64xf32> to vector<8x64xbf16>
    %c0_1 = arith.constant 0 : index
    %c0_2 = arith.constant 0 : index
    %2 = vector.load %arg4[%c0_1, %c0_2] : memref<8x128xf32, #tpu.memory_space<vmem>>, vector<8x128xf32>
    %c0_3 = arith.constant 0 : index
    %c0_4 = arith.constant 0 : index
    %3 = vector.load %arg2[%c0_3, %c0_4] : memref<64x128xbf16, #tpu.memory_space<vmem>>, vector<64x128xbf16>
    %cst = arith.constant dense<0.000000e+00> : vector<8x128xf32>
    %4 = tpu.matmul %1, %3, %cst {dimension_numbers = #tpu.dot_dimension_numbers<[1], [0], [0], [1], [0, 0, 1, 1], [], []>} : vector<8x64xbf16>, vector<64x128xbf16>, vector<8x128xf32> -> vector<8x128xf32>
    %5 = vector.extract_strided_slice %2 {offsets = [0, 0], sizes = [1, 128], strides = [1, 1]} : vector<8x128xf32> to vector<1x128xf32>
    %6 = vector.broadcast %5 : vector<1x128xf32> to vector<8x128xf32>
    %7 = arith.addf %4, %6 : vector<8x128xf32>
    %cst_5 = arith.constant 0.000000e+00 : f32
    %8 = vector.broadcast %cst_5 : f32 to vector<8x128xf32>
    %9 = arith.maximumf %7, %8 : vector<8x128xf32>
    %10 = arith.truncf %9 : vector<8x128xf32> to vector<8x128xbf16>
    %c0_6 = arith.constant 0 : index
    %c0_7 = arith.constant 0 : index
    %c0_8 = arith.constant 0 : index
    %11 = vector.load %arg3[%c0_6, %c0_7, %c0_8] : memref<2x128x128xbf16, #tpu.memory_space<vmem>>, vector<1x128x128xbf16>
    %12 = vector.shape_cast %11 : vector<1x128x128xbf16> to vector<128x128xbf16>
    %cst_9 = arith.constant dense<0.000000e+00> : vector<8x128xf32>
    %13 = tpu.matmul %10, %12, %cst_9 {dimension_numbers = #tpu.dot_dimension_numbers<[1], [0], [0], [1], [0, 0, 1, 1], [], []>} : vector<8x128xbf16>, vector<128x128xbf16>, vector<8x128xf32> -> vector<8x128xf32>
    %14 = vector.extract_strided_slice %2 {offsets = [1, 0], sizes = [1, 128], strides = [1, 1]} : vector<8x128xf32> to vector<1x128xf32>
    %15 = vector.broadcast %14 : vector<1x128xf32> to vector<8x128xf32>
    %16 = arith.addf %13, %15 : vector<8x128xf32>
    %cst_10 = arith.constant 0.000000e+00 : f32
    %17 = vector.broadcast %cst_10 : f32 to vector<8x128xf32>
    %18 = arith.maximumf %16, %17 : vector<8x128xf32>
    %19 = arith.truncf %18 : vector<8x128xf32> to vector<8x128xbf16>
    %c1 = arith.constant 1 : index
    %c0_11 = arith.constant 0 : index
    %c0_12 = arith.constant 0 : index
    %20 = vector.load %arg3[%c1, %c0_11, %c0_12] : memref<2x128x128xbf16, #tpu.memory_space<vmem>>, vector<1x128x128xbf16>
    %21 = vector.shape_cast %20 : vector<1x128x128xbf16> to vector<128x128xbf16>
    %cst_13 = arith.constant dense<0.000000e+00> : vector<8x128xf32>
    %22 = tpu.matmul %19, %21, %cst_13 {dimension_numbers = #tpu.dot_dimension_numbers<[1], [0], [0], [1], [0, 0, 1, 1], [], []>} : vector<8x128xbf16>, vector<128x128xbf16>, vector<8x128xf32> -> vector<8x128xf32>
    %23 = vector.extract_strided_slice %2 {offsets = [2, 0], sizes = [1, 128], strides = [1, 1]} : vector<8x128xf32> to vector<1x128xf32>
    %24 = vector.broadcast %23 : vector<1x128xf32> to vector<8x128xf32>
    %25 = arith.addf %22, %24 : vector<8x128xf32>
    %26 = vector.extract_strided_slice %25 {offsets = [0, 0], sizes = [8, 1], strides = [1, 1]} : vector<8x128xf32> to vector<8x1xf32>
    %c0_14 = arith.constant 0 : index
    %c0_15 = arith.constant 0 : index
    %27 = vector.load %arg5[%c0_14, %c0_15] : memref<8x1xf32, #tpu.memory_space<vmem>>, vector<8x1xf32>
    tpu.vector_store %arg5[%c0_14, %c0_15], %26 {strides = array<i32>} : memref<8x1xf32, #tpu.memory_space<vmem>>, vector<8x1xf32>,
    return
  }
  func.func @transform_0(%arg0: i32) -> (i32, i32) {
    %c0_i32 = arith.constant 0 : i32
    %c0_i32_0 = arith.constant 0 : i32
    return %arg0, %c0_i32 : i32, i32
  }
  func.func @transform_1(%arg0: i32) -> (i32, i32) {
    %c0_i32 = arith.constant 0 : i32
    %c0_i32_0 = arith.constant 0 : i32
    %c0_i32_1 = arith.constant 0 : i32
    return %c0_i32, %c0_i32_0 : i32, i32
  }
  func.func @transform_2(%arg0: i32) -> (i32, i32, i32) {
    %c0_i32 = arith.constant 0 : i32
    %c0_i32_0 = arith.constant 0 : i32
    %c0_i32_1 = arith.constant 0 : i32
    %c0_i32_2 = arith.constant 0 : i32
    return %c0_i32, %c0_i32_0, %c0_i32_1 : i32, i32, i32
  }
  func.func @transform_3(%arg0: i32) -> (i32, i32) {
    %c0_i32 = arith.constant 0 : i32
    %c0_i32_0 = arith.constant 0 : i32
    %c0_i32_1 = arith.constant 0 : i32
    return %c0_i32, %c0_i32_0 : i32, i32
  }
  func.func @transform_4(%arg0: i32) -> (i32, i32) {
    %c0_i32 = arith.constant 0 : i32
    %c0_i32_0 = arith.constant 0 : i32
    return %arg0, %c0_i32 : i32, i32
  }
}

</mosaic_0001>

<llo_original>
// kernel: tpu_custom_call.1
$region0: #{tpu_custom_call.1}
  #allocation0 [shape = 'u32[]', space=smem, size = 0x4, offset = 0x4, fixed_abs, tag = 'smem constant byte address 0x4 - core index']
  #allocation1 [shape = 'u32[72,128]{1,0:T(1,128)}', space=vmem, size = 0x9000, scoped, tag = 'internal scratch']
  %s0 = inlined_call_operand.hbm [shape: f32[8,64], index: 0, kind: input, shape index: {}]
  %s1 = inlined_call_operand.hbm [shape: bf16[64,128], index: 1, kind: input, shape index: {}]
  %s2 = inlined_call_operand.hbm [shape: bf16[2,128,128], index: 2, kind: input, shape index: {}]
  %s3 = inlined_call_operand.hbm [shape: f32[8,128], index: 3, kind: input, shape index: {}]
  %s4 = inlined_call_operand.vmem [shape: f32[8,1], index: 4, kind: output, shape index: {}]
  %s5 = sld [smem:[#allocation0]]
  $region42: #{tpu_custom_call.1} parent=0
    _
  %s7 = ssub.s32 1, %s5
  %s8 = scalar_select 0, %s7, %s5
  $region1: #{tpu_custom_call.1} parent=0
    #allocation2 [shape = 'u8[4096]{0}', space=vmem, size = 0x1000, scoped, tag = 'input window, operand 0, single buffered']
    #allocation3 [shape = 's32[1]{0}', space=sflag, size = 0x4, scoped, tag = 'scoped memory for tpu_custom_call.1']
    #allocation4 [shape = 'u8[16384]{0}', space=vmem, size = 0x4000, scoped, tag = 'input window, operand 1, single buffered']
    #allocation5 [shape = 's32[1]{0}', space=sflag, size = 0x4, scoped, tag = 'scoped memory for tpu_custom_call.1']
    #allocation6 [shape = 'u8[65536]{0}', space=vmem, size = 0x10000, scoped, tag = 'input window, operand 2, single buffered']
    #allocation7 [shape = 'u8[4096]{0}', space=vmem, size = 0x1000, scoped, tag = 'input window, operand 3, single buffered']
    #allocation8 [shape = 's32[1]{0}', space=sflag, size = 0x4, scoped, tag = 'scoped memory for tpu_custom_call.1']
    %9 = vsyncpa [#allocation3], 0
    %10 = vsyncpa [#allocation5], 0
    %11 = vsyncpa [#allocation8], 0
    // Predicated region
    $region2: #{tpu_custom_call.1} parent=1 // pred_check
      _
    $region3: #{tpu_custom_call.1} parent=1 // pred_check_branch
      %13 = sbr.rel (0) target = $region5
    $region4: #{tpu_custom_call.1} parent=1 // pred_region
      %15 = vsyncadd [#allocation3], 0
      %s17 = sshll.u32 %s0, 4
      %s18 = int_to_ptr.hbm [resolvable:$true] %s17
      %s19 = sshll.u32 [#allocation2], 4
      %s20 = int_to_ptr.vmem [resolvable:$true] %s19
      %22 = dma.hbm_to_vmem [thread:$0]  %s18, 128, %s20, [#allocation3]
    $region5: #{tpu_custom_call.1} parent=1 // pred_fallthru
      _
    // Predicated region
    $region6: #{tpu_custom_call.1} parent=1 // pred_check
      _
    $region7: #{tpu_custom_call.1} parent=1 // pred_check_branch
      %24 = sbr.rel (0) target = $region9
    $region8: #{tpu_custom_call.1} parent=1 // pred_region
      %26 = vsyncadd [#allocation5], 0
      %s27 = sshll.u32 %s1, 4
      %s28 = int_to_ptr.hbm [resolvable:$true] %s27
      %s29 = sshll.u32 [#allocation4], 4
      %s30 = int_to_ptr.vmem [resolvable:$true] %s29
      %35 = dma.hbm_to_vmem [thread:$0]  %s28, 512, %s30, [#allocation5], 64, 64, 4
    $region9: #{tpu_custom_call.1} parent=1 // pred_fallthru
      _
    // Predicated region
    $region10: #{tpu_custom_call.1} parent=1 // pred_check
      _
    $region11: #{tpu_custom_call.1} parent=1 // pred_check_branch
      %37 = sbr.rel (0) target = $region13
    $region12: #{tpu_custom_call.1} parent=1 // pred_region
      %39 = vsyncadd [#allocation5], 0
      %s40 = sshll.u32 %s2, 4
      %s41 = int_to_ptr.hbm [resolvable:$true] %s40
      %s42 = sshll.u32 [#allocation6], 4
      %s43 = int_to_ptr.vmem [resolvable:$true] %s42
      %48 = dma.hbm_to_vmem [thread:$0]  %s41, 2048, %s43, [#allocation5], 64, 64, 4
    $region13: #{tpu_custom_call.1} parent=1 // pred_fallthru
      _
    // Predicated region
    $region14: #{tpu_custom_call.1} parent=1 // pred_check
      _
    $region15: #{tpu_custom_call.1} parent=1 // pred_check_branch
      %50 = sbr.rel (0) target = $region17
    $region16: #{tpu_custom_call.1} parent=1 // pred_region
      %52 = vsyncadd [#allocation8], 0
      %s54 = sshll.u32 %s3, 4
      %s55 = int_to_ptr.hbm [resolvable:$true] %s54
      %s56 = sshll.u32 [#allocation7], 4
      %s57 = int_to_ptr.vmem [resolvable:$true] %s56
      %59 = dma.hbm_to_vmem [thread:$0]  %s55, 128, %s57, [#allocation8]
    $region17: #{tpu_custom_call.1} parent=1 // pred_fallthru
      _
    // Predicated region
    $region18: #{tpu_custom_call.1} parent=1 // pred_check
      _
    $region19: #{tpu_custom_call.1} parent=1 // pred_check_branch
      %61 = sbr.rel (0) target = $region21
    $region20: #{tpu_custom_call.1} parent=1 // pred_region
      %63 = dma.done [#allocation3], 128
    $region21: #{tpu_custom_call.1} parent=1 // pred_fallthru
      _
    // Predicated region
    $region22: #{tpu_custom_call.1} parent=1 // pred_check
      _
    $region23: #{tpu_custom_call.1} parent=1 // pred_check_branch
      %65 = sbr.rel (0) target = $region25
    $region24: #{tpu_custom_call.1} parent=1 // pred_region
      %67 = dma.done [#allocation5], 512
    $region25: #{tpu_custom_call.1} parent=1 // pred_fallthru
      _
    // Predicated region
    $region26: #{tpu_custom_call.1} parent=1 // pred_check
      _
    $region27: #{tpu_custom_call.1} parent=1 // pred_check_branch
      %69 = sbr.rel (0) target = $region29
    $region28: #{tpu_custom_call.1} parent=1 // pred_region
      %71 = dma.done [#allocation5], 2048
    $region29: #{tpu_custom_call.1} parent=1 // pred_fallthru
      _
    // Predicated region
    $region30: #{tpu_custom_call.1} parent=1 // pred_check
      _
    $region31: #{tpu_custom_call.1} parent=1 // pred_check_branch
      %73 = sbr.rel (0) target = $region33
    $region32: #{tpu_custom_call.1} parent=1 // pred_region
      %75 = dma.done [#allocation8], 128
    $region33: #{tpu_custom_call.1} parent=1 // pred_fallthru
      _
    %v77 = vld [vmem:[#allocation2] sm:$0xff]
    %v78 = vpack.c.bf16 %v77, %v77
    %v79 = vld [vmem:[#allocation7] sm:$0xff]
    %v80 = vld [vmem:[#allocation4] sm:$0xf]
    %v81 = vld [vmem:[#allocation4 + $0x4] sm:$0xf]
    %v82 = vld [vmem:[#allocation4 + $0x8] sm:$0xf]
    %v83 = vld [vmem:[#allocation4 + $0xc] sm:$0xf]
    %v84 = vld [vmem:[#allocation4 + $0x10] sm:$0xf]
    %v85 = vld [vmem:[#allocation4 + $0x14] sm:$0xf]
    %v86 = vld [vmem:[#allocation4 + $0x18] sm:$0xf]
    %v87 = vld [vmem:[#allocation4 + $0x1c] sm:$0xf]
    %v88 = vperm.slane %v79, 0
    %v97 = vunpack.c.l.b16 %v80
    %v98 = vunpack.c.l.b16 %v81
    %v99 = vunpack.c.l.b16 %v82
    %v100 = vunpack.c.l.b16 %v83
    %v101 = vunpack.c.l.b16 %v84
    %v102 = vunpack.c.l.b16 %v85
    %v103 = vunpack.c.l.b16 %v86
    %v104 = vunpack.c.l.b16 %v87
    %v105 = vpack.c.b16 %v98, %v97
    %v106 = vpack.c.b16 %v100, %v99
    %v107 = vpack.c.b16 %v102, %v101
    %v108 = vpack.c.b16 %v104, %v103
    %vm113 = vcmask 523264
    %v115 = vsel %vm113, %v78, 0
    %117 = vmatpush.bf16.msra.mxu0 0
    %118 = vmatpush.bf16.msra.mxu0 0
    %119 = vmatpush.bf16.msra.mxu0 0
    %120 = vmatpush.bf16.msra.mxu0 0
    %121 = vmatpush.bf16.msra.mxu0 %v108
    %122 = vmatpush.bf16.msra.mxu0 %v107
    %123 = vmatpush.bf16.msra.mxu0 %v106
    %124 = vmatpush.bf16.msra.mxu0 %v105
    %125 = vmatmul.bf16.gmra.mxu0 %v115
    %v126 = vpop.f32.mrf.mxu0
    %v127 = vadd.f32 %v88, %v126
    %v128 = vpop.f32.mrf.mxu0
    %129 = vdwg.mxu0
    %v130 = vmax.f32 %v127, 0.0
    %v131 = vpack.c.bf16 %v130, %v130
    %v132 = vld [vmem:[#allocation6] sm:$0xf]
    %v133 = vld [vmem:[#allocation6 + $0x4] sm:$0xf]
    %v134 = vld [vmem:[#allocation6 + $0x8] sm:$0xf]
    %v135 = vld [vmem:[#allocation6 + $0xc] sm:$0xf]
    %v136 = vld [vmem:[#allocation6 + $0x10] sm:$0xf]
    %v137 = vld [vmem:[#allocation6 + $0x14] sm:$0xf]
    %v138 = vld [vmem:[#allocation6 + $0x18] sm:$0xf]
    %v139 = vld [vmem:[#allocation6 + $0x1c] sm:$0xf]
    %v140 = vld [vmem:[#allocation6 + $0x20] sm:$0xf]
    %v141 = vld [vmem:[#allocation6 + $0x24] sm:$0xf]
    %v142 = vld [vmem:[#allocation6 + $0x28] sm:$0xf]
    %v143 = vld [vmem:[#allocation6 + $0x2c] sm:$0xf]
    %v144 = vld [vmem:[#allocation6 + $0x30] sm:$0xf]
    %v145 = vld [vmem:[#allocation6 + $0x34] sm:$0xf]
    %v146 = vld [vmem:[#allocation6 + $0x38] sm:$0xf]
    %v147 = vld [vmem:[#allocation6 + $0x3c] sm:$0xf]
    %v148 = vperm.slane %v79, 1
    %v165 = vunpack.c.l.b16 %v132
    %v166 = vunpack.c.l.b16 %v133
    %v167 = vunpack.c.l.b16 %v134
    %v168 = vunpack.c.l.b16 %v135
    %v169 = vunpack.c.l.b16 %v136
    %v170 = vunpack.c.l.b16 %v137
    %v171 = vunpack.c.l.b16 %v138
    %v172 = vunpack.c.l.b16 %v139
    %v173 = vunpack.c.l.b16 %v140
    %v174 = vunpack.c.l.b16 %v141
    %v175 = vunpack.c.l.b16 %v142
    %v176 = vunpack.c.l.b16 %v143
    %v177 = vunpack.c.l.b16 %v144
    %v178 = vunpack.c.l.b16 %v145
    %v179 = vunpack.c.l.b16 %v146
    %v180 = vunpack.c.l.b16 %v147
    %v181 = vpack.c.b16 %v166, %v165
    %v182 = vpack.c.b16 %v168, %v167
    %v183 = vpack.c.b16 %v170, %v169
    %v184 = vpack.c.b16 %v172, %v171
    %v185 = vpack.c.b16 %v174, %v173
    %v186 = vpack.c.b16 %v176, %v175
    %v187 = vpack.c.b16 %v178, %v177
    %v188 = vpack.c.b16 %v180, %v179
    %197 = vmatpush.bf16.msra.mxu0 %v188
    %198 = vmatpush.bf16.msra.mxu0 %v187
    %199 = vmatpush.bf16.msra.mxu0 %v186
    %200 = vmatpush.bf16.msra.mxu0 %v185
    %201 = vmatpush.bf16.msra.mxu0 %v184
    %202 = vmatpush.bf16.msra.mxu0 %v183
    %203 = vmatpush.bf16.msra.mxu0 %v182
    %204 = vmatpush.bf16.msra.mxu0 %v181
    %205 = vmatmul.bf16.gmra.mxu0 %v131
    %v206 = vpop.f32.mrf.mxu0
    %v207 = vadd.f32 %v148, %v206
    %v208 = vpop.f32.mrf.mxu0
    %209 = vdwg.mxu0
    %v210 = vmax.f32 %v207, 0.0
    %v211 = vpack.c.bf16 %v210, %v210
    %s212 = scalar_lea.vmem [#allocation6], 64
    %v213 = vld [vmem:[%s212] sm:$0xf]
    %v214 = vld [vmem:[%s212 + $0x4] sm:$0xf]
    %v215 = vld [vmem:[%s212 + $0x8] sm:$0xf]
    %v216 = vld [vmem:[%s212 + $0xc] sm:$0xf]
    %v217 = vld [vmem:[%s212 + $0x10] sm:$0xf]
    %v218 = vld [vmem:[%s212 + $0x14] sm:$0xf]
    %v219 = vld [vmem:[%s212 + $0x18] sm:$0xf]
    %v220 = vld [vmem:[%s212 + $0x1c] sm:$0xf]
    %v221 = vld [vmem:[%s212 + $0x20] sm:$0xf]
    %v222 = vld [vmem:[%s212 + $0x24] sm:$0xf]
    %v223 = vld [vmem:[%s212 + $0x28] sm:$0xf]
    %v224 = vld [vmem:[%s212 + $0x2c] sm:$0xf]
    %v225 = vld [vmem:[%s212 + $0x30] sm:$0xf]
    %v226 = vld [vmem:[%s212 + $0x34] sm:$0xf]
    %v227 = vld [vmem:[%s212 + $0x38] sm:$0xf]
    %v228 = vld [vmem:[%s212 + $0x3c] sm:$0xf]
    %v229 = vperm.slane %v79, 2
    %v246 = vunpack.c.l.b16 %v213
    %v247 = vunpack.c.l.b16 %v214
    %v248 = vunpack.c.l.b16 %v215
    %v249 = vunpack.c.l.b16 %v216
    %v250 = vunpack.c.l.b16 %v217
    %v251 = vunpack.c.l.b16 %v218
    %v252 = vunpack.c.l.b16 %v219
    %v253 = vunpack.c.l.b16 %v220
    %v254 = vunpack.c.l.b16 %v221
    %v255 = vunpack.c.l.b16 %v222
    %v256 = vunpack.c.l.b16 %v223
    %v257 = vunpack.c.l.b16 %v224
    %v258 = vunpack.c.l.b16 %v225
    %v259 = vunpack.c.l.b16 %v226
    %v260 = vunpack.c.l.b16 %v227
    %v261 = vunpack.c.l.b16 %v228
    %v262 = vpack.c.b16 %v247, %v246
    %v263 = vpack.c.b16 %v249, %v248
    %v264 = vpack.c.b16 %v251, %v250
    %v265 = vpack.c.b16 %v253, %v252
    %v266 = vpack.c.b16 %v255, %v254
    %v267 = vpack.c.b16 %v257, %v256
    %v268 = vpack.c.b16 %v259, %v258
    %v269 = vpack.c.b16 %v261, %v260
    %278 = vmatpush.bf16.msra.mxu0 %v269
    %279 = vmatpush.bf16.msra.mxu0 %v268
    %280 = vmatpush.bf16.msra.mxu0 %v267
    %281 = vmatpush.bf16.msra.mxu0 %v266
    %282 = vmatpush.bf16.msra.mxu0 %v265
    %283 = vmatpush.bf16.msra.mxu0 %v264
    %284 = vmatpush.bf16.msra.mxu0 %v263
    %285 = vmatpush.bf16.msra.mxu0 %v262
    %286 = vmatmul.bf16.gmra.mxu0 %v211
    %v287 = vpop.f32.mrf.mxu0
    %v288 = vadd.f32 %v229, %v287
    %v289 = vpop.f32.mrf.mxu0
    %290 = vdwg.mxu0
    %vm291 = vcmask 7168
    %292 = vst.msk [vmem:[%s4] sm:$0xff] %vm291, %v288
    // Predicated region
    $region34: #{tpu_custom_call.1} parent=1 // pred_check
      _
    $region35: #{tpu_custom_call.1} parent=1 // pred_check_branch
      %294 = sbr.rel (0) target = $region37
    $region36: #{tpu_custom_call.1} parent=1 // pred_region
      _
    $region37: #{tpu_custom_call.1} parent=1 // pred_fallthru
      _
    // Predicated region
    $region38: #{tpu_custom_call.1} parent=1 // pred_check
      _
    $region39: #{tpu_custom_call.1} parent=1 // pred_check_branch
      %296 = sbr.rel (0) target = $region41
    $region40: #{tpu_custom_call.1} parent=1 // pred_region
      _
    $region41: #{tpu_custom_call.1} parent=1 // pred_fallthru
      _
    %297 = vsyncpa [#allocation3], 1
    %298 = vsyncpa [#allocation5], 1
    %299 = vsyncpa [#allocation8], 1

</llo_original>
